<compile_context>
chip_gen: v7x
topology: tpu7x:2x2x1
jax: 0.10.0
libtpu: 0.0.40
codegen_flags: <defaults>
</compile_context>

<pallas_src>
import jax
import jax.numpy as jnp
from jax.experimental import pallas as pl
from jax.experimental.pallas import tpu as pltpu


def model_forward(x, params):
    """Returns v10 of the torch module for NCHW float32 input x."""
    w1, b1 = params["w1"], params["b1"]    # (8, 3), (8,)  == torch conv.weight[:, :, 0, 0]
    w2, b2 = params["w2"], params["b2"]    # (8, 8), (8,)
    n, cin, h, w = x.shape
    cout = w1.shape[0]

    # Output spatial dims: conv1 (k=1,s=1,p=1) -> H+2; conv2 (k=1,s=2,p=1).
    ho = (h + 3) // 2 + 1
    wo = (w + 3) // 2 + 1
    hw = ho * wo

    # Fold the "(3 + conv) / 6" hardsigmoid affine into weights/biases.
    w1s = (w1 / 6.0).astype(jnp.float32)
    b1s = ((3.0 + b1) / 6.0).reshape(cout, 1).astype(jnp.float32)
    w2s = (w2 / 6.0).astype(jnp.float32)
    b2s = ((3.0 + b2) / 6.0).reshape(cout, 1).astype(jnp.float32)

    # Only every 2nd pixel of conv1's (padded) output feeds conv2, so gather
    # exactly those x pixels, keeping NCHW (channels -> sublanes, flattened
    # pixels -> lanes).  xe[:, :, oh, ow] = x[:, :, 2*oh-2, 2*ow-2] when in
    # range, else 0; the zeros reproduce conv1's zero padding (border values
    # become hardsig(b1)).  allow_input_fusion below lets XLA fuse this
    # pad/slice/reshape producer into the pallas call's input instead of
    # materializing xe in HBM as a separate kernel.
    pad_bh = 2 * ho - 3 - h
    pad_bw = 2 * wo - 3 - w
    xe = jnp.pad(x, ((0, 0), (0, 0), (2, pad_bh), (2, pad_bw)))[:, :, ::2, ::2]
    xe = xe.reshape(n, cin, hw)

    def kernel(xe_ref, w1_ref, b1_ref, w2_ref, b2_ref, o_ref):
        # Lane mask for positions where conv2's stride-2 sample lands on its
        # OWN zero padding (conv2 input must be exactly 0 there, not
        # hardsig(b1)).  Built in-kernel from the flattened pixel index; the
        # float floor-divide is exact for integer pixel indices < 2^24.
        pos = jax.lax.broadcasted_iota(jnp.int32, (1, hw), 1).astype(jnp.float32)
        ohf = jnp.floor((pos + 0.5) * (1.0 / wo))       # oh = pixel // wo
        owf = pos - ohf * wo                            # ow = pixel %  wo
        keep = ((ohf >= 0.5) & (2.0 * ohf <= h + 2.5)
                & (owf >= 0.5) & (2.0 * owf <= w + 2.5))
        m = jnp.where(keep, 1.0, 0.0)                   # (1, hw) f32

        w1k = w1_ref[...]
        b1k = b1_ref[...]
        w2k = w2_ref[...]
        b2k = b2_ref[...]

        # Whole batch handled in this single grid step; n is tiny, so a short
        # unrolled loop of 2D matmuls (channels on sublanes, pixels on lanes)
        # avoids n grid steps worth of per-step overhead.
        for i in range(n):
            u = jnp.dot(w1k, xe_ref[i], preferred_element_type=jnp.float32)
            u = jnp.clip(u + b1k, 0.0, 1.0) * m     # == clamp(3+conv1,0,6)/6, conv2-pad zeroed
            y = jnp.dot(w2k, u, preferred_element_type=jnp.float32)
            y = jnp.clip(y + b2k, 0.0, 1.0)         # == clamp(3+conv2,0,6)/6
            o_ref[i] = y.astype(o_ref.dtype)

    out = pl.pallas_call(
        kernel,
        out_shape=jax.ShapeDtypeStruct((n, cout, hw), x.dtype),
        # Single grid step: at these sizes the kernel is overhead-bound and
        # everything (a few hundred KB) fits comfortably in VMEM.
        # TODO(synk): on v7x split the batch into 2 "parallel" blocks (2 TCs),
        # and add an hw-tiling grid axis for very large images (VMEM limit).
        grid=(1,),
        in_specs=[
            pl.BlockSpec((n, cin, hw), lambda i: (0, 0, 0)),   # gathered pixels
            pl.BlockSpec((cout, cin), lambda i: (0, 0)),       # w1 / 6
            pl.BlockSpec((cout, 1), lambda i: (0, 0)),         # (b1 + 3) / 6
            pl.BlockSpec((cout, cout), lambda i: (0, 0)),      # w2 / 6
            pl.BlockSpec((cout, 1), lambda i: (0, 0)),         # (b2 + 3) / 6
        ],
        out_specs=pl.BlockSpec((n, cout, hw), lambda i: (0, 0, 0)),
        compiler_params=pltpu.CompilerParams(
            dimension_semantics=("arbitrary",),
            allow_input_fusion=[True, False, False, False, False],
        ),
    )(xe, w1s, b1s, w2s, b2s)

    # v2/v4/v5, the bias_conv branch and v11..v17 are dead code w.r.t. the
    # returned v10, so they are intentionally not implemented.
    return out.reshape(n, cout, ho, wo)


def reference_forward(x_nchw, params):
    """Plain-JAX reference mirroring the PyTorch forward, for correctness."""
    w1, b1, w2, b2 = params["w1"], params["b1"], params["w2"], params["b2"]
    xt = jnp.transpose(x_nchw, (0, 2, 3, 1))
    xp = jnp.pad(xt, ((0, 0), (1, 1), (1, 1), (0, 0)))
    v1 = jnp.einsum("nhwc,oc->nhwo", xp, w1) + b1
    v6 = jnp.clip(3.0 + v1, 0.0, 6.0) / 6.0
    v6s = jnp.pad(v6, ((0, 0), (1, 1), (1, 1), (0, 0)))[:, ::2, ::2, :]
    v7 = jnp.einsum("nhwc,oc->nhwo", v6s, w2) + b2
    v10 = jnp.clip(3.0 + v7, 0.0, 6.0) / 6.0
    return jnp.transpose(v10, (0, 3, 1, 2))


if __name__ == "__main__":
    key = jax.random.PRNGKey(0)
    k1, k2, k3, k4, kx, kx2 = jax.random.split(key, 6)

    # Deterministic synthetic parameters, torch layout: weight (Cout, Cin).
    params = {
        "w1": 0.1 * jax.random.normal(k1, (8, 3), jnp.float32),
        "b1": 0.1 * jax.random.normal(k2, (8,), jnp.float32),
        "w2": 0.1 * jax.random.normal(k3, (8, 8), jnp.float32),
        "b2": 0.1 * jax.random.normal(k4, (8,), jnp.float32),
    }

    fwd = jax.jit(model_forward)

    # Small even-sized input consistent with the module (original: (5,3,64,64)).
    x = jax.random.normal(kx, (2, 3, 16, 16), jnp.float32)
    out = jax.block_until_ready(fwd(x, params))
    ref = jax.block_until_ready(reference_forward(x, params))
    assert out.shape == (2, 8, 10, 10), out.shape
    assert jnp.allclose(out, ref, atol=1e-5, rtol=1e-5), "mismatch vs reference (even)"

    # Odd-sized input: exercises conv2's bottom/right zero-pad being sampled.
    x2 = jax.random.normal(kx2, (1, 3, 13, 15), jnp.float32)
    out2 = jax.block_until_ready(fwd(x2, params))
    ref2 = jax.block_until_ready(reference_forward(x2, params))
    assert out2.shape == (1, 8, 9, 10), out2.shape
    assert jnp.allclose(out2, ref2, atol=1e-5, rtol=1e-5), "mismatch vs reference (odd)"

    print("KERNEL_OK")
</pallas_src>

<mosaic_0001>
module attributes {stable_mosaic.version = 11 : i64} {
  func.func @kernel(%arg0: i32, %arg1: memref<2x3x100xf32, #tpu.memory_space<vmem>>, %arg2: memref<8x3xf32, #tpu.memory_space<vmem>>, %arg3: memref<8x1xf32, #tpu.memory_space<vmem>>, %arg4: memref<8x8xf32, #tpu.memory_space<vmem>>, %arg5: memref<8x1xf32, #tpu.memory_space<vmem>>, %arg6: memref<2x8x100xf32, #tpu.memory_space<vmem>>) attributes {dimension_semantics = [#tpu.dimension_semantics<arbitrary>], iteration_bounds = array<i64: 1>, scalar_prefetch = 0 : i64, scratch_operands = 0 : i64, tpu.core_type = #tpu.core_type<tc>, window_params = [{pipeline_mode = #tpu.pipeline_mode<synchronous>, transform_indices = @transform_0, window_bounds = array<i64: 2, 3, 100>}, {pipeline_mode = #tpu.pipeline_mode<synchronous>, transform_indices = @transform_1, window_bounds = array<i64: 8, 3>}, {pipeline_mode = #tpu.pipeline_mode<synchronous>, transform_indices = @transform_2, window_bounds = array<i64: 8, 1>}, {pipeline_mode = #tpu.pipeline_mode<synchronous>, transform_indices = @transform_3, window_bounds = array<i64: 8, 8>}, {pipeline_mode = #tpu.pipeline_mode<synchronous>, transform_indices = @transform_4, window_bounds = array<i64: 8, 1>}, {pipeline_mode = #tpu.pipeline_mode<synchronous>, transform_indices = @transform_5, window_bounds = array<i64: 2, 8, 100>}]} {
    %0 = tpu.iota {dimensions = array<i32: 1>} : vector<1x100xi32>
    %1 = arith.sitofp %0 : vector<1x100xi32> to vector<1x100xf32>
    %cst = arith.constant 5.000000e-01 : f32
    %2 = vector.broadcast %cst : f32 to vector<1x100xf32>
    %3 = arith.addf %1, %2 : vector<1x100xf32>
    %cst_0 = arith.constant 1.000000e-01 : f32
    %4 = vector.broadcast %cst_0 : f32 to vector<1x100xf32>
    %5 = arith.mulf %3, %4 : vector<1x100xf32>
    %6 = math.floor %5 : vector<1x100xf32>
    %cst_1 = arith.constant 1.000000e+01 : f32
    %7 = vector.broadcast %cst_1 : f32 to vector<1x100xf32>
    %8 = arith.mulf %6, %7 : vector<1x100xf32>
    %9 = arith.subf %1, %8 : vector<1x100xf32>
    %cst_2 = arith.constant 5.000000e-01 : f32
    %10 = vector.broadcast %cst_2 : f32 to vector<1x100xf32>
    %11 = arith.cmpf oge, %6, %10 : vector<1x100xf32>
    %cst_3 = arith.constant 2.000000e+00 : f32
    %12 = vector.broadcast %cst_3 : f32 to vector<1x100xf32>
    %13 = arith.mulf %12, %6 : vector<1x100xf32>
    %cst_4 = arith.constant 1.850000e+01 : f32
    %14 = vector.broadcast %cst_4 : f32 to vector<1x100xf32>
    %15 = arith.cmpf ole, %13, %14 : vector<1x100xf32>
    %16 = arith.andi %11, %15 : vector<1x100xi1>
    %cst_5 = arith.constant 5.000000e-01 : f32
    %17 = vector.broadcast %cst_5 : f32 to vector<1x100xf32>
    %18 = arith.cmpf oge, %9, %17 : vector<1x100xf32>
    %19 = arith.andi %16, %18 : vector<1x100xi1>
    %cst_6 = arith.constant 2.000000e+00 : f32
    %20 = vector.broadcast %cst_6 : f32 to vector<1x100xf32>
    %21 = arith.mulf %20, %9 : vector<1x100xf32>
    %cst_7 = arith.constant 1.850000e+01 : f32
    %22 = vector.broadcast %cst_7 : f32 to vector<1x100xf32>
    %23 = arith.cmpf ole, %21, %22 : vector<1x100xf32>
    %24 = arith.andi %19, %23 : vector<1x100xi1>
    %cst_8 = arith.constant 1.000000e+00 : f32
    %cst_9 = arith.constant 0.000000e+00 : f32
    %25 = vector.broadcast %cst_8 : f32 to vector<1x100xf32>
    %26 = vector.broadcast %cst_9 : f32 to vector<1x100xf32>
    %27 = arith.select %24, %25, %26 : vector<1x100xi1>, vector<1x100xf32>
    %c0 = arith.constant 0 : index
    %c0_10 = arith.constant 0 : index
    %28 = vector.load %arg2[%c0, %c0_10] : memref<8x3xf32, #tpu.memory_space<vmem>>, vector<8x3xf32>
    %c0_11 = arith.constant 0 : index
    %c0_12 = arith.constant 0 : index
    %29 = vector.load %arg3[%c0_11, %c0_12] : memref<8x1xf32, #tpu.memory_space<vmem>>, vector<8x1xf32>
    %c0_13 = arith.constant 0 : index
    %c0_14 = arith.constant 0 : index
    %30 = vector.load %arg4[%c0_13, %c0_14] : memref<8x8xf32, #tpu.memory_space<vmem>>, vector<8x8xf32>
    %c0_15 = arith.constant 0 : index
    %c0_16 = arith.constant 0 : index
    %31 = vector.load %arg5[%c0_15, %c0_16] : memref<8x1xf32, #tpu.memory_space<vmem>>, vector<8x1xf32>
    %c0_17 = arith.constant 0 : index
    %c0_18 = arith.constant 0 : index
    %c0_19 = arith.constant 0 : index
    %32 = vector.load %arg1[%c0_17, %c0_18, %c0_19] : memref<2x3x100xf32, #tpu.memory_space<vmem>>, vector<1x3x100xf32>
    %33 = vector.shape_cast %32 : vector<1x3x100xf32> to vector<3x100xf32>
    %cst_20 = arith.constant dense<0.000000e+00> : vector<8x100xf32>
    %34 = tpu.matmul %28, %33, %cst_20 {dimension_numbers = #tpu.dot_dimension_numbers<[1], [0], [0], [1], [0, 0, 1, 1], [], []>} : vector<8x3xf32>, vector<3x100xf32>, vector<8x100xf32> -> vector<8x100xf32>
    %35 = vector.broadcast %29 : vector<8x1xf32> to vector<8x100xf32>
    %36 = arith.addf %34, %35 : vector<8x100xf32>
    %cst_21 = arith.constant 0.000000e+00 : f32
    %cst_22 = arith.constant 1.000000e+00 : f32
    %37 = vector.broadcast %cst_21 : f32 to vector<8x100xf32>
    %38 = arith.maximumf %37, %36 : vector<8x100xf32>
    %39 = vector.broadcast %cst_22 : f32 to vector<8x100xf32>
    %40 = arith.minimumf %39, %38 : vector<8x100xf32>
    %41 = vector.broadcast %27 : vector<1x100xf32> to vector<8x100xf32>
    %42 = arith.mulf %40, %41 : vector<8x100xf32>
    %cst_23 = arith.constant dense<0.000000e+00> : vector<8x100xf32>
    %43 = tpu.matmul %30, %42, %cst_23 {dimension_numbers = #tpu.dot_dimension_numbers<[1], [0], [0], [1], [0, 0, 1, 1], [], []>} : vector<8x8xf32>, vector<8x100xf32>, vector<8x100xf32> -> vector<8x100xf32>
    %44 = vector.broadcast %31 : vector<8x1xf32> to vector<8x100xf32>
    %45 = arith.addf %43, %44 : vector<8x100xf32>
    %cst_24 = arith.constant 0.000000e+00 : f32
    %cst_25 = arith.constant 1.000000e+00 : f32
    %46 = vector.broadcast %cst_24 : f32 to vector<8x100xf32>
    %47 = arith.maximumf %46, %45 : vector<8x100xf32>
    %48 = vector.broadcast %cst_25 : f32 to vector<8x100xf32>
    %49 = arith.minimumf %48, %47 : vector<8x100xf32>
    %c0_26 = arith.constant 0 : index
    %c0_27 = arith.constant 0 : index
    %c0_28 = arith.constant 0 : index
    %50 = vector.load %arg6[%c0_26, %c0_27, %c0_28] : memref<2x8x100xf32, #tpu.memory_space<vmem>>, vector<1x8x100xf32>
    %51 = vector.shape_cast %50 : vector<1x8x100xf32> to vector<8x100xf32>
    %52 = vector.shape_cast %49 : vector<8x100xf32> to vector<1x8x100xf32>
    tpu.vector_store %arg6[%c0_26, %c0_27, %c0_28], %52 {strides = array<i32>} : memref<2x8x100xf32, #tpu.memory_space<vmem>>, vector<1x8x100xf32>,
    %c1 = arith.constant 1 : index
    %c0_29 = arith.constant 0 : index
    %c0_30 = arith.constant 0 : index
    %53 = vector.load %arg1[%c1, %c0_29, %c0_30] : memref<2x3x100xf32, #tpu.memory_space<vmem>>, vector<1x3x100xf32>
    %54 = vector.shape_cast %53 : vector<1x3x100xf32> to vector<3x100xf32>
    %cst_31 = arith.constant dense<0.000000e+00> : vector<8x100xf32>
    %55 = tpu.matmul %28, %54, %cst_31 {dimension_numbers = #tpu.dot_dimension_numbers<[1], [0], [0], [1], [0, 0, 1, 1], [], []>} : vector<8x3xf32>, vector<3x100xf32>, vector<8x100xf32> -> vector<8x100xf32>
    %56 = vector.broadcast %29 : vector<8x1xf32> to vector<8x100xf32>
    %57 = arith.addf %55, %56 : vector<8x100xf32>
    %cst_32 = arith.constant 0.000000e+00 : f32
    %cst_33 = arith.constant 1.000000e+00 : f32
    %58 = vector.broadcast %cst_32 : f32 to vector<8x100xf32>
    %59 = arith.maximumf %58, %57 : vector<8x100xf32>
    %60 = vector.broadcast %cst_33 : f32 to vector<8x100xf32>
    %61 = arith.minimumf %60, %59 : vector<8x100xf32>
    %62 = vector.broadcast %27 : vector<1x100xf32> to vector<8x100xf32>
    %63 = arith.mulf %61, %62 : vector<8x100xf32>
    %cst_34 = arith.constant dense<0.000000e+00> : vector<8x100xf32>
    %64 = tpu.matmul %30, %63, %cst_34 {dimension_numbers = #tpu.dot_dimension_numbers<[1], [0], [0], [1], [0, 0, 1, 1], [], []>} : vector<8x8xf32>, vector<8x100xf32>, vector<8x100xf32> -> vector<8x100xf32>
    %65 = vector.broadcast %31 : vector<8x1xf32> to vector<8x100xf32>
    %66 = arith.addf %64, %65 : vector<8x100xf32>
    %cst_35 = arith.constant 0.000000e+00 : f32
    %cst_36 = arith.constant 1.000000e+00 : f32
    %67 = vector.broadcast %cst_35 : f32 to vector<8x100xf32>
    %68 = arith.maximumf %67, %66 : vector<8x100xf32>
    %69 = vector.broadcast %cst_36 : f32 to vector<8x100xf32>
    %70 = arith.minimumf %69, %68 : vector<8x100xf32>
    %c1_37 = arith.constant 1 : index
    %c0_38 = arith.constant 0 : index
    %c0_39 = arith.constant 0 : index
    %71 = vector.load %arg6[%c1_37, %c0_38, %c0_39] : memref<2x8x100xf32, #tpu.memory_space<vmem>>, vector<1x8x100xf32>
    %72 = vector.shape_cast %71 : vector<1x8x100xf32> to vector<8x100xf32>
    %73 = vector.shape_cast %70 : vector<8x100xf32> to vector<1x8x100xf32>
    tpu.vector_store %arg6[%c1_37, %c0_38, %c0_39], %73 {strides = array<i32>} : memref<2x8x100xf32, #tpu.memory_space<vmem>>, vector<1x8x100xf32>,
    return
  }
  func.func @transform_0(%arg0: i32) -> (i32, i32, i32) {
    %c0_i32 = arith.constant 0 : i32
    %c0_i32_0 = arith.constant 0 : i32
    %c0_i32_1 = arith.constant 0 : i32
    %c0_i32_2 = arith.constant 0 : i32
    return %c0_i32, %c0_i32_0, %c0_i32_1 : i32, i32, i32
  }
  func.func @transform_1(%arg0: i32) -> (i32, i32) {
    %c0_i32 = arith.constant 0 : i32
    %c0_i32_0 = arith.constant 0 : i32
    %c0_i32_1 = arith.constant 0 : i32
    return %c0_i32, %c0_i32_0 : i32, i32
  }
  func.func @transform_2(%arg0: i32) -> (i32, i32) {
    %c0_i32 = arith.constant 0 : i32
    %c0_i32_0 = arith.constant 0 : i32
    %c0_i32_1 = arith.constant 0 : i32
    return %c0_i32, %c0_i32_0 : i32, i32
  }
  func.func @transform_3(%arg0: i32) -> (i32, i32) {
    %c0_i32 = arith.constant 0 : i32
    %c0_i32_0 = arith.constant 0 : i32
    %c0_i32_1 = arith.constant 0 : i32
    return %c0_i32, %c0_i32_0 : i32, i32
  }
  func.func @transform_4(%arg0: i32) -> (i32, i32) {
    %c0_i32 = arith.constant 0 : i32
    %c0_i32_0 = arith.constant 0 : i32
    %c0_i32_1 = arith.constant 0 : i32
    return %c0_i32, %c0_i32_0 : i32, i32
  }
  func.func @transform_5(%arg0: i32) -> (i32, i32, i32) {
    %c0_i32 = arith.constant 0 : i32
    %c0_i32_0 = arith.constant 0 : i32
    %c0_i32_1 = arith.constant 0 : i32
    %c0_i32_2 = arith.constant 0 : i32
    return %c0_i32, %c0_i32_0, %c0_i32_1 : i32, i32, i32
  }
}

</mosaic_0001>

<llo_original>
// kernel: model_forward.1
$region0: #{model_forward.1}
  #allocation0 [shape = 'u32[]', space=smem, size = 0x4, offset = 0x4, fixed_abs, tag = 'smem constant byte address 0x4 - core index']
  #allocation1 [shape = 'u32[144,128]{1,0:T(1,128)}', space=vmem, size = 0x12000, scoped, tag = 'internal scratch']
  %s0 = inlined_call_operand.vmem [shape: f32[2,3,100], index: 0, kind: input, shape index: {}]
  %s1 = inlined_call_operand.vmem [shape: f32[8,3], index: 1, kind: input, shape index: {}]
  %s2 = inlined_call_operand.vmem [shape: f32[8,1], index: 2, kind: input, shape index: {}]
  %s3 = inlined_call_operand.vmem [shape: f32[8,8], index: 3, kind: input, shape index: {}]
  %s4 = inlined_call_operand.vmem [shape: f32[8,1], index: 4, kind: input, shape index: {}]
  %s5 = inlined_call_operand.vmem [shape: f32[2,8,100], index: 5, kind: output, shape index: {}]
  %s6 = sld [smem:[#allocation0]]
  $region30: #{model_forward.1} parent=0
    _
  %s8 = ssub.s32 1, %s6
  %s9 = scalar_select 0, %s8, %s6
  // Predicated region
  $region2: #{model_forward.1} parent=0 // pred_check
    _
  $region3: #{model_forward.1} parent=0 // pred_check_branch
    %11 = sbr.rel (0) target = $region5
  $region4: #{model_forward.1} parent=0 // pred_region
    _
  $region5: #{model_forward.1} parent=0 // pred_fallthru
    _
  // Predicated region
  $region6: #{model_forward.1} parent=0 // pred_check
    _
  $region7: #{model_forward.1} parent=0 // pred_check_branch
    %13 = sbr.rel (0) target = $region9
  $region8: #{model_forward.1} parent=0 // pred_region
    _
  $region9: #{model_forward.1} parent=0 // pred_fallthru
    _
  // Predicated region
  $region10: #{model_forward.1} parent=0 // pred_check
    _
  $region11: #{model_forward.1} parent=0 // pred_check_branch
    %15 = sbr.rel (0) target = $region13
  $region12: #{model_forward.1} parent=0 // pred_region
    _
  $region13: #{model_forward.1} parent=0 // pred_fallthru
    _
  // Predicated region
  $region14: #{model_forward.1} parent=0 // pred_check
    _
  $region15: #{model_forward.1} parent=0 // pred_check_branch
    %17 = sbr.rel (0) target = $region17
  $region16: #{model_forward.1} parent=0 // pred_region
    _
  $region17: #{model_forward.1} parent=0 // pred_fallthru
    _
  // Predicated region
  $region18: #{model_forward.1} parent=0 // pred_check
    _
  $region19: #{model_forward.1} parent=0 // pred_check_branch
    %19 = sbr.rel (0) target = $region21
  $region20: #{model_forward.1} parent=0 // pred_region
    _
  $region21: #{model_forward.1} parent=0 // pred_fallthru
    _
  %v20 = vlaneseq
  %v21 = vand.u32 %v20, 127
  %v22 = vcvt.s32.f32 %v21
  %v23 = vadd.f32 %v22, 0.5
  %v24 = vmul.f32 %v23, 0.1
  %v25 = vfloor.f32 %v24
  %v26 = vmul.f32 %v25, 10.0
  %v27 = vsub.f32 %v22, %v26
  %vm28 = vcmp.ge.f32.partialorder %v25, 0.5
  %v29 = vmul.f32 %v25, 2.0
  %vm30 = vcmp.le.f32.partialorder %v29, 18.5
  %vm31 = vmand %vm28, %vm30
  %vm32 = vcmp.ge.f32.partialorder %v27, 0.5
  %vm33 = vmand %vm31, %vm32
  %v34 = vmul.f32 %v27, 2.0
  %vm35 = vcmp.le.f32.partialorder %v34, 18.5
  %vm36 = vmand %vm33, %vm35
  %v37 = vsel %vm36, 1.0, 0.0
  %v38 = vld [vmem:[%s1] sm:$0xff]
  %v39 = vld [vmem:[%s2] sm:$0xff]
  %v40 = vld [vmem:[%s3] sm:$0xff]
  %v41 = vld [vmem:[%s4] sm:$0xff]
  %v42 = vld [vmem:[%s0] sm:$0x7]
  %44 = vset.pattern.permute.xlu0 0
  %45 = vperm.xlu0 %44, %v39
  %v46 = vpop.permute.xlu0 %45
  %vm48 = vcmask 23552
  %v50 = vsel %vm48, %v38, 0
  %vm52 = vcmask 1042432
  %v54 = vsel %vm52, %v42, 0
  %56 = vmatprep.subr.mxu0 0.0
  %57 = vmatpush1.msra.mxu0 %v54
  %58 = vmatprep.subr.mxu0 0.0
  %59 = vmatpush1.msra.mxu0 0.0
  %60 = vmatprep.subr.mxu0 0.0
  %61 = vmatpush1.msra.mxu0 0.0
  %62 = vmatprep.subr.mxu0 0.0
  %63 = vmatpush1.msra.mxu0 0.0
  %64 = vmatprep.subr.mxu0 0.0
  %65 = vmatpush1.msra.mxu0 0.0
  %66 = vmatprep.subr.mxu0 0.0
  %67 = vmatpush1.msra.mxu0 0.0
  %68 = vmatprep.subr.mxu0 0.0
  %69 = vmatpush1.msra.mxu0 0.0
  %70 = vmatprep.subr.mxu0 0.0
  %71 = vmatpush1.msra.mxu0 0.0
  %72 = vmatprep.subr.mxu0 0.0
  %73 = vmatpush1.msra.mxu0 0.0
  %74 = vmatprep.subr.mxu0 0.0
  %75 = vmatpush1.msra.mxu0 0.0
  %76 = vmatprep.subr.mxu0 0.0
  %77 = vmatpush1.msra.mxu0 0.0
  %78 = vmatprep.subr.mxu0 0.0
  %79 = vmatpush1.msra.mxu0 0.0
  %80 = vmatprep.subr.mxu0 0.0
  %81 = vmatpush1.msra.mxu0 0.0
  %82 = vmatprep.subr.mxu0 0.0
  %83 = vmatpush1.msra.mxu0 0.0
  %84 = vmatprep.subr.mxu0 0.0
  %85 = vmatpush1.msra.mxu0 0.0
  %86 = vmatprep.subr.mxu0 0.0
  %87 = vmatpush1.msra.mxu0 0.0
  %88 = vmatprep.subr.mxu0 0.0
  %89 = vmatpush1.msra.mxu0 0.0
  %90 = vmatprep.subr.mxu0 0.0
  %91 = vmatpush1.msra.mxu0 0.0
  %92 = vmatprep.subr.mxu0 0.0
  %93 = vmatpush1.msra.mxu0 0.0
  %94 = vmatprep.subr.mxu0 0.0
  %95 = vmatpush1.msra.mxu0 0.0
  %96 = vmatprep.subr.mxu0 0.0
  %97 = vmatpush1.msra.mxu0 0.0
  %98 = vmatprep.subr.mxu0 0.0
  %99 = vmatpush1.msra.mxu0 0.0
  %100 = vmatprep.subr.mxu0 0.0
  %101 = vmatpush1.msra.mxu0 0.0
  %102 = vmatprep.subr.mxu0 0.0
  %103 = vmatpush1.msra.mxu0 0.0
  %104 = vmatprep.subr.mxu0 0.0
  %105 = vmatpush1.msra.mxu0 0.0
  %106 = vmatprep.subr.mxu0 0.0
  %107 = vmatpush1.msra.mxu0 0.0
  %108 = vmatprep.subr.mxu0 0.0
  %109 = vmatpush1.msra.mxu0 0.0
  %110 = vmatprep.subr.mxu0 0.0
  %111 = vmatpush1.msra.mxu0 0.0
  %112 = vmatprep.subr.mxu0 0.0
  %113 = vmatpush1.msra.mxu0 0.0
  %114 = vmatprep.subr.mxu0 0.0
  %115 = vmatpush1.msra.mxu0 0.0
  %116 = vmatprep.subr.mxu0 0.0
  %117 = vmatpush1.msra.mxu0 0.0
  %118 = vmatprep.subr.mxu0 0.0
  %119 = vmatpush1.msra.mxu0 0.0
  %120 = vmatprep.mubr.f32.mxu0 0.0
  %121 = vmatmul.mubr.f32.gmra.mrb[0].mxu0 %v50
  %v122 = vpop.f32.mrb[0].mxu0
  %v123 = vadd.f32 %v46, %v122
  %v124 = vpop.f32.mrb[0].mxu0
  %125 = vdwg.mxu0
  %v126 = vmax.f32 %v123, 0.0
  %v127 = vmin.f32 %v126, 1.0
  %v128 = vmul.f32 %v127, %v37
  %130 = vset.pattern.permute.xlu0 0
  %131 = vperm.xlu0 %130, %v41
  %v132 = vpop.permute.xlu0 %131
  %vm134 = vcmask 64512
  %v136 = vsel %vm134, %v40, 0
  %138 = vmatprep.subr.mxu0 0.0
  %139 = vmatpush1.msra.mxu0 %v128
  %140 = vmatprep.subr.mxu0 0.0
  %141 = vmatpush1.msra.mxu0 0.0
  %142 = vmatprep.subr.mxu0 0.0
  %143 = vmatpush1.msra.mxu0 0.0
  %144 = vmatprep.subr.mxu0 0.0
  %145 = vmatpush1.msra.mxu0 0.0
  %146 = vmatprep.subr.mxu0 0.0
  %147 = vmatpush1.msra.mxu0 0.0
  %148 = vmatprep.subr.mxu0 0.0
  %149 = vmatpush1.msra.mxu0 0.0
  %150 = vmatprep.subr.mxu0 0.0
  %151 = vmatpush1.msra.mxu0 0.0
  %152 = vmatprep.subr.mxu0 0.0
  %153 = vmatpush1.msra.mxu0 0.0
  %154 = vmatprep.subr.mxu0 0.0
  %155 = vmatpush1.msra.mxu0 0.0
  %156 = vmatprep.subr.mxu0 0.0
  %157 = vmatpush1.msra.mxu0 0.0
  %158 = vmatprep.subr.mxu0 0.0
  %159 = vmatpush1.msra.mxu0 0.0
  %160 = vmatprep.subr.mxu0 0.0
  %161 = vmatpush1.msra.mxu0 0.0
  %162 = vmatprep.subr.mxu0 0.0
  %163 = vmatpush1.msra.mxu0 0.0
  %164 = vmatprep.subr.mxu0 0.0
  %165 = vmatpush1.msra.mxu0 0.0
  %166 = vmatprep.subr.mxu0 0.0
  %167 = vmatpush1.msra.mxu0 0.0
  %168 = vmatprep.subr.mxu0 0.0
  %169 = vmatpush1.msra.mxu0 0.0
  %170 = vmatprep.subr.mxu0 0.0
  %171 = vmatpush1.msra.mxu0 0.0
  %172 = vmatprep.subr.mxu0 0.0
  %173 = vmatpush1.msra.mxu0 0.0
  %174 = vmatprep.subr.mxu0 0.0
  %175 = vmatpush1.msra.mxu0 0.0
  %176 = vmatprep.subr.mxu0 0.0
  %177 = vmatpush1.msra.mxu0 0.0
  %178 = vmatprep.subr.mxu0 0.0
  %179 = vmatpush1.msra.mxu0 0.0
  %180 = vmatprep.subr.mxu0 0.0
  %181 = vmatpush1.msra.mxu0 0.0
  %182 = vmatprep.subr.mxu0 0.0
  %183 = vmatpush1.msra.mxu0 0.0
  %184 = vmatprep.subr.mxu0 0.0
  %185 = vmatpush1.msra.mxu0 0.0
  %186 = vmatprep.subr.mxu0 0.0
  %187 = vmatpush1.msra.mxu0 0.0
  %188 = vmatprep.subr.mxu0 0.0
  %189 = vmatpush1.msra.mxu0 0.0
  %190 = vmatprep.subr.mxu0 0.0
  %191 = vmatpush1.msra.mxu0 0.0
  %192 = vmatprep.subr.mxu0 0.0
  %193 = vmatpush1.msra.mxu0 0.0
  %194 = vmatprep.subr.mxu0 0.0
  %195 = vmatpush1.msra.mxu0 0.0
  %196 = vmatprep.subr.mxu0 0.0
  %197 = vmatpush1.msra.mxu0 0.0
  %198 = vmatprep.subr.mxu0 0.0
  %199 = vmatpush1.msra.mxu0 0.0
  %200 = vmatprep.subr.mxu0 0.0
  %201 = vmatpush1.msra.mxu0 0.0
  %202 = vmatprep.mubr.f32.mxu0 0.0
  %203 = vmatmul.mubr.f32.gmra.mrb[0].mxu0 %v136
  %v204 = vpop.f32.mrb[0].mxu0
  %v205 = vadd.f32 %v132, %v204
  %v206 = vpop.f32.mrb[0].mxu0
  %207 = vdwg.mxu0
  %v208 = vmax.f32 %v205, 0.0
  %v209 = vmin.f32 %v208, 1.0
  %vm210 = vcmask 818176
  %211 = vst.msk [vmem:[%s5] sm:$0xff] %vm210, %v209
  %s212 = scalar_lea.vmem %s0, 4
  %v213 = vld [vmem:[%s212] sm:$0x7]
  %v215 = vsel %vm52, %v213, 0
  %217 = vmatprep.subr.mxu0 0.0
  %218 = vmatpush1.msra.mxu0 %v215
  %219 = vmatprep.subr.mxu0 0.0
  %220 = vmatpush1.msra.mxu0 0.0
  %221 = vmatprep.subr.mxu0 0.0
  %222 = vmatpush1.msra.mxu0 0.0
  %223 = vmatprep.subr.mxu0 0.0
  %224 = vmatpush1.msra.mxu0 0.0
  %225 = vmatprep.subr.mxu0 0.0
  %226 = vmatpush1.msra.mxu0 0.0
  %227 = vmatprep.subr.mxu0 0.0
  %228 = vmatpush1.msra.mxu0 0.0
  %229 = vmatprep.subr.mxu0 0.0
  %230 = vmatpush1.msra.mxu0 0.0
  %231 = vmatprep.subr.mxu0 0.0
  %232 = vmatpush1.msra.mxu0 0.0
  %233 = vmatprep.subr.mxu0 0.0
  %234 = vmatpush1.msra.mxu0 0.0
  %235 = vmatprep.subr.mxu0 0.0
  %236 = vmatpush1.msra.mxu0 0.0
  %237 = vmatprep.subr.mxu0 0.0
  %238 = vmatpush1.msra.mxu0 0.0
  %239 = vmatprep.subr.mxu0 0.0
  %240 = vmatpush1.msra.mxu0 0.0
  %241 = vmatprep.subr.mxu0 0.0
  %242 = vmatpush1.msra.mxu0 0.0
  %243 = vmatprep.subr.mxu0 0.0
  %244 = vmatpush1.msra.mxu0 0.0
  %245 = vmatprep.subr.mxu0 0.0
  %246 = vmatpush1.msra.mxu0 0.0
  %247 = vmatprep.subr.mxu0 0.0
  %248 = vmatpush1.msra.mxu0 0.0
  %249 = vmatprep.subr.mxu0 0.0
  %250 = vmatpush1.msra.mxu0 0.0
  %251 = vmatprep.subr.mxu0 0.0
  %252 = vmatpush1.msra.mxu0 0.0
  %253 = vmatprep.subr.mxu0 0.0
  %254 = vmatpush1.msra.mxu0 0.0
  %255 = vmatprep.subr.mxu0 0.0
  %256 = vmatpush1.msra.mxu0 0.0
  %257 = vmatprep.subr.mxu0 0.0
  %258 = vmatpush1.msra.mxu0 0.0
  %259 = vmatprep.subr.mxu0 0.0
  %260 = vmatpush1.msra.mxu0 0.0
  %261 = vmatprep.subr.mxu0 0.0
  %262 = vmatpush1.msra.mxu0 0.0
  %263 = vmatprep.subr.mxu0 0.0
  %264 = vmatpush1.msra.mxu0 0.0
  %265 = vmatprep.subr.mxu0 0.0
  %266 = vmatpush1.msra.mxu0 0.0
  %267 = vmatprep.subr.mxu0 0.0
  %268 = vmatpush1.msra.mxu0 0.0
  %269 = vmatprep.subr.mxu0 0.0
  %270 = vmatpush1.msra.mxu0 0.0
  %271 = vmatprep.subr.mxu0 0.0
  %272 = vmatpush1.msra.mxu0 0.0
  %273 = vmatprep.subr.mxu0 0.0
  %274 = vmatpush1.msra.mxu0 0.0
  %275 = vmatprep.subr.mxu0 0.0
  %276 = vmatpush1.msra.mxu0 0.0
  %277 = vmatprep.subr.mxu0 0.0
  %278 = vmatpush1.msra.mxu0 0.0
  %279 = vmatprep.subr.mxu0 0.0
  %280 = vmatpush1.msra.mxu0 0.0
  %281 = vmatprep.mubr.f32.mxu0 0.0
  %282 = vmatmul.mubr.f32.gmra.mrb[0].mxu0 %v50
  %v283 = vpop.f32.mrb[0].mxu0
  %v284 = vadd.f32 %v46, %v283
  %v285 = vpop.f32.mrb[0].mxu0
  %286 = vdwg.mxu0
  %v287 = vmax.f32 %v284, 0.0
  %v288 = vmin.f32 %v287, 1.0
  %v289 = vmul.f32 %v288, %v37
  %290 = vmatprep.subr.mxu0 0.0
  %291 = vmatpush1.msra.mxu0 %v289
  %292 = vmatprep.subr.mxu0 0.0
  %293 = vmatpush1.msra.mxu0 0.0
  %294 = vmatprep.subr.mxu0 0.0
  %295 = vmatpush1.msra.mxu0 0.0
  %296 = vmatprep.subr.mxu0 0.0
  %297 = vmatpush1.msra.mxu0 0.0
  %298 = vmatprep.subr.mxu0 0.0
  %299 = vmatpush1.msra.mxu0 0.0
  %300 = vmatprep.subr.mxu0 0.0
  %301 = vmatpush1.msra.mxu0 0.0
  %302 = vmatprep.subr.mxu0 0.0
  %303 = vmatpush1.msra.mxu0 0.0
  %304 = vmatprep.subr.mxu0 0.0
  %305 = vmatpush1.msra.mxu0 0.0
  %306 = vmatprep.subr.mxu0 0.0
  %307 = vmatpush1.msra.mxu0 0.0
  %308 = vmatprep.subr.mxu0 0.0
  %309 = vmatpush1.msra.mxu0 0.0
  %310 = vmatprep.subr.mxu0 0.0
  %311 = vmatpush1.msra.mxu0 0.0
  %312 = vmatprep.subr.mxu0 0.0
  %313 = vmatpush1.msra.mxu0 0.0
  %314 = vmatprep.subr.mxu0 0.0
  %315 = vmatpush1.msra.mxu0 0.0
  %316 = vmatprep.subr.mxu0 0.0
  %317 = vmatpush1.msra.mxu0 0.0
  %318 = vmatprep.subr.mxu0 0.0
  %319 = vmatpush1.msra.mxu0 0.0
  %320 = vmatprep.subr.mxu0 0.0
  %321 = vmatpush1.msra.mxu0 0.0
  %322 = vmatprep.subr.mxu0 0.0
  %323 = vmatpush1.msra.mxu0 0.0
  %324 = vmatprep.subr.mxu0 0.0
  %325 = vmatpush1.msra.mxu0 0.0
  %326 = vmatprep.subr.mxu0 0.0
  %327 = vmatpush1.msra.mxu0 0.0
  %328 = vmatprep.subr.mxu0 0.0
  %329 = vmatpush1.msra.mxu0 0.0
  %330 = vmatprep.subr.mxu0 0.0
  %331 = vmatpush1.msra.mxu0 0.0
  %332 = vmatprep.subr.mxu0 0.0
  %333 = vmatpush1.msra.mxu0 0.0
  %334 = vmatprep.subr.mxu0 0.0
  %335 = vmatpush1.msra.mxu0 0.0
  %336 = vmatprep.subr.mxu0 0.0
  %337 = vmatpush1.msra.mxu0 0.0
  %338 = vmatprep.subr.mxu0 0.0
  %339 = vmatpush1.msra.mxu0 0.0
  %340 = vmatprep.subr.mxu0 0.0
  %341 = vmatpush1.msra.mxu0 0.0
  %342 = vmatprep.subr.mxu0 0.0
  %343 = vmatpush1.msra.mxu0 0.0
  %344 = vmatprep.subr.mxu0 0.0
  %345 = vmatpush1.msra.mxu0 0.0
  %346 = vmatprep.subr.mxu0 0.0
  %347 = vmatpush1.msra.mxu0 0.0
  %348 = vmatprep.subr.mxu0 0.0
  %349 = vmatpush1.msra.mxu0 0.0
  %350 = vmatprep.subr.mxu0 0.0
  %351 = vmatpush1.msra.mxu0 0.0
  %352 = vmatprep.subr.mxu0 0.0
  %353 = vmatpush1.msra.mxu0 0.0
  %354 = vmatprep.mubr.f32.mxu0 0.0
  %355 = vmatmul.mubr.f32.gmra.mrb[0].mxu0 %v136
  %v356 = vpop.f32.mrb[0].mxu0
  %v357 = vadd.f32 %v132, %v356
  %v358 = vpop.f32.mrb[0].mxu0
  %359 = vdwg.mxu0
  %v360 = vmax.f32 %v357, 0.0
  %v361 = vmin.f32 %v360, 1.0
  %s362 = scalar_lea.vmem %s5, 8
  %363 = vst.msk [vmem:[%s362] sm:$0xff] %vm210, %v361
  // Predicated region
  $region22: #{model_forward.1} parent=0 // pred_check
    _
  $region23: #{model_forward.1} parent=0 // pred_check_branch
    %365 = sbr.rel (0) target = $region25
  $region24: #{model_forward.1} parent=0 // pred_region
    _
  $region25: #{model_forward.1} parent=0 // pred_fallthru
    _
  // Predicated region
  $region26: #{model_forward.1} parent=0 // pred_check
    _
  $region27: #{model_forward.1} parent=0 // pred_check_branch
    %367 = sbr.rel (0) target = $region29
  $region28: #{model_forward.1} parent=0 // pred_region
    _
  $region29: #{model_forward.1} parent=0 // pred_fallthru
    _

</llo_original>
